<compile_context>
chip_gen: v7x
topology: tpu7x:2x2x1
jax: 0.10.0
libtpu: 0.0.40
codegen_flags: <defaults>
</compile_context>

<pallas_src>
import functools

import jax
import jax.numpy as jnp
import numpy as np
from jax.experimental import pallas as pl
from jax.experimental.pallas import tpu as pltpu

_LANE = 128


def _device_kind():
    try:
        return jax.devices()[0].device_kind.lower()
    except Exception:
        return ""


def _default_tile_rows():
    """Rows (of 128 lanes) per block, sized per generation to sit near HBM roofline."""
    kind = _device_kind()
    if "v5 lite" in kind or "v5e" in kind or "v5litepod" in kind:
        return 8192          # ~4 MiB f32 block; 8 MiB double-buffered < 16 MiB scoped default
    return 16384             # v6e / v7x / default: ~8 MiB f32 block


def _default_num_splits():
    kind = _device_kind()
    return 2 if ("v7" in kind or "7x" in kind) else 1   # v7x: 2 TensorCores per chip


def _abs_pow(x, p):
    """|x|**p elementwise; repeated VPU multiplies for small integer p (avoid EUP power)."""
    pf = float(p)
    if pf == 1.0:
        return jnp.abs(x)
    if pf == 2.0:
        return x * x
    if pf.is_integer() and 2.0 < pf <= 16.0:
        ip = int(pf)
        a = x if ip % 2 == 0 else jnp.abs(x)   # even power makes the sign irrelevant
        out = a
        for _ in range(ip - 1):
            out = out * a
        return out
    return jnp.power(jnp.abs(x), pf)           # non-integer p: EUP-bound path


def _lp_partial_kernel(x_ref, out_ref, acc_ref, *, p, total_rows, ragged):
    """One grid step of one split: accumulate per-lane partial sums of |x|^p."""
    i = pl.program_id(1)

    @pl.when(i == 0)
    def _():
        acc_ref[...] = jnp.zeros_like(acc_ref)

    x = x_ref[...].astype(jnp.float32)          # (tile_rows, 128)
    tile_rows = x.shape[0]
    v = _abs_pow(x, p)

    if ragged:
        # Rows past the logical end (ragged last block / overshoot blocks of the parallel
        # split) hold unspecified VMEM; select them away (select, not multiply, so garbage
        # NaN/Inf cannot leak into the sum).
        blk = pl.program_id(0) * pl.num_programs(1) + i
        row_ids = blk * tile_rows + jax.lax.broadcasted_iota(jnp.int32, x.shape, 0)
        v = jnp.where(row_ids < total_rows, v, 0.0)

    if tile_rows % 8 == 0:
        # Whole-vreg adds into the (8,128) accumulator; no per-step sublane reduce.
        acc_ref[...] += v.reshape(-1, 8, _LANE).sum(axis=0)
    else:
        # Tiny full-array block that is not a sublane multiple.
        acc_ref[0:1, :] += jnp.sum(v, axis=0, keepdims=True)

    @pl.when(i == pl.num_programs(1) - 1)
    def _():
        out_ref[...] = jnp.sum(acc_ref[...], axis=0, keepdims=True)   # (1, 128) lane partials


@functools.partial(jax.jit, static_argnames=("p", "max_tile_rows", "num_splits"))
def lp_norm_pallas(z, p=1, max_tile_rows=None, num_splits=None):
    """(sum |z|^p) ** (1/p) over all elements of z (z.norm(p=p), p > 0)."""
    if p is None or float(p) <= 0.0:
        # TODO(synk): p=0 (count-nonzero), p=inf and 'fro'-style matrix norms not implemented.
        raise NotImplementedError("lp_norm_pallas only supports p > 0")

    out_dtype = z.dtype if jnp.issubdtype(z.dtype, jnp.floating) else jnp.float32

    zf = jnp.ravel(z)
    n = zf.shape[0]
    if n == 0:
        return jnp.zeros((), out_dtype)

    # Pad only the sub-vreg remainder (< 128 zeros) so the flat vector reshapes to (rows,128);
    # zeros are loss-neutral for p > 0.  No pad op at all when n % 128 == 0 (common case).
    # TODO(synk): when n % 128 != 0 this pad still copies the flat array once; a manual-DMA
    # (memory_space=pl.ANY) tail handler would remove even that.
    rem = n % _LANE
    if rem:
        zf = jnp.pad(zf, (0, _LANE - rem))
    x2d = zf.reshape(-1, _LANE)
    rows = x2d.shape[0]

    itemsize = jnp.dtype(z.dtype).itemsize
    sub = max(8, 32 // max(1, itemsize))   # native sublane multiple: 8 f32 / 16 bf16 / 32 int8
    if max_tile_rows is None:
        max_tile_rows = _default_tile_rows()
    max_tile_rows = max(sub, int(max_tile_rows))

    if rows <= max_tile_rows:
        tile_rows = rows                   # single full-extent block (always a legal block shape)
    else:
        tile_rows = max(sub, (max_tile_rows // sub) * sub)
    n_blocks = pl.cdiv(rows, tile_rows)

    if num_splits is None:
        num_splits = _default_num_splits()
    num_splits = max(1, min(int(num_splits), n_blocks))
    inner_steps = pl.cdiv(n_blocks, num_splits)

    ragged = (tile_rows * n_blocks != rows) or (num_splits * inner_steps != n_blocks)

    # VMEM budget: double-buffered input block + f32 elementwise temporaries + headroom.
    block_bytes = tile_rows * _LANE * itemsize
    block_f32 = tile_rows * _LANE * 4
    needed = 2 * block_bytes + 3 * block_f32 + (8 << 20)
    cap = (48 << 20) if _default_num_splits() == 2 else (96 << 20)   # v7x has 64 MiB physical
    vmem_limit = int(min(cap, max(32 << 20, needed)))

    kernel = functools.partial(_lp_partial_kernel, p=p, total_rows=rows, ragged=ragged)

    def x_index_map(s, i):
        # Clamp so overshoot steps of the parallel split stay in bounds; their contribution
        # is masked out in-kernel via the row-id compare.
        return (jnp.minimum(s * inner_steps + i, n_blocks - 1), 0)

    partials = pl.pallas_call(
        kernel,
        out_shape=jax.ShapeDtypeStruct((num_splits, _LANE), jnp.float32),
        grid=(num_splits, inner_steps),
        in_specs=[pl.BlockSpec((tile_rows, _LANE), x_index_map)],
        out_specs=pl.BlockSpec((1, _LANE), lambda s, i: (s, 0)),
        scratch_shapes=[pltpu.VMEM((8, _LANE), jnp.float32)],
        compiler_params=pltpu.CompilerParams(
            dimension_semantics=("parallel", "arbitrary"),
            vmem_limit_bytes=vmem_limit),
    )(x2d)

    total = jnp.sum(partials)              # tiny (num_splits, 128) reduce, fused under jit
    pf = float(p)
    if pf == 1.0:
        res = total
    elif pf == 2.0:
        res = jnp.sqrt(total)
    else:
        res = jnp.power(total, 1.0 / pf)
    return res.astype(out_dtype)


def regularization_loss(student_io_dict, teacher_io_dict, *, module_path,
                        io_type="output", is_from_teacher=False, p=1):
    """Mirrors RegularizationLoss.forward: pick z from the io dict and return z.norm(p)."""
    io_dict = teacher_io_dict if is_from_teacher else student_io_dict
    z = io_dict[module_path][io_type]
    return lp_norm_pallas(z, p=p)


if __name__ == "__main__":
    key = jax.random.PRNGKey(0)
    k1, k2 = jax.random.split(key)

    # Hooked feature map: (batch=2, channels=4, 16, 16).
    z = jax.random.normal(k1, (2, 4, 16, 16), jnp.float32)
    student_io_dict = {"layer3": {"output": z}}
    teacher_io_dict = {}

    loss_p1 = regularization_loss(student_io_dict, teacher_io_dict,
                                  module_path="layer3", io_type="output",
                                  is_from_teacher=False, p=1)
    loss_p2 = regularization_loss(student_io_dict, teacher_io_dict,
                                  module_path="layer3", io_type="output",
                                  is_from_teacher=False, p=2)

    # Non-aligned shape, tiny tiles, forced 2-way parallel split: exercises the ragged edge
    # block, the overshoot-block clamp+mask, multi-step accumulation and integer-power path.
    z_odd = jax.random.normal(k2, (3, 5, 17, 19), jnp.float32)
    loss_odd_p1 = lp_norm_pallas(z_odd, p=1, max_tile_rows=8, num_splits=2)
    loss_odd_p3 = lp_norm_pallas(z_odd, p=3, max_tile_rows=16, num_splits=2)

    jax.block_until_ready((loss_p1, loss_p2, loss_odd_p1, loss_odd_p3))

    np.testing.assert_allclose(np.asarray(loss_p1), np.asarray(jnp.sum(jnp.abs(z))),
                               rtol=1e-5, atol=1e-5)
    np.testing.assert_allclose(np.asarray(loss_p2), np.asarray(jnp.sqrt(jnp.sum(z * z))),
                               rtol=1e-5, atol=1e-5)
    np.testing.assert_allclose(np.asarray(loss_odd_p1), np.asarray(jnp.sum(jnp.abs(z_odd))),
                               rtol=1e-5, atol=1e-4)
    ref_p3 = jnp.power(jnp.sum(jnp.abs(z_odd) ** 3), 1.0 / 3.0)
    np.testing.assert_allclose(np.asarray(loss_odd_p3), np.asarray(ref_p3),
                               rtol=1e-4, atol=1e-4)
    print("KERNEL_OK")
</pallas_src>

<mosaic_0001>
module attributes {stable_mosaic.version = 11 : i64} {
  func.func @_lp_partial_kernel(%arg0: i32, %arg1: i32, %arg2: memref<16x128xf32, #tpu.memory_space<vmem>>, %arg3: memref<1x128xf32, #tpu.memory_space<vmem>>, %arg4: memref<8x128xf32, #tpu.memory_space<vmem>>) attributes {dimension_semantics = [#tpu.dimension_semantics<parallel>, #tpu.dimension_semantics<arbitrary>], iteration_bounds = array<i64: 1, 1>, scalar_prefetch = 0 : i64, scratch_operands = 1 : i64, tpu.core_type = #tpu.core_type<tc>, window_params = [{transform_indices = @transform_0, window_bounds = array<i64: 16, 128>}, {transform_indices = @transform_1, window_bounds = array<i64: 1, 128>}]} {
    %c0_i32 = arith.constant 0 : i32
    %0 = arith.cmpi eq, %arg1, %c0_i32 : i32
    %1 = arith.extui %0 : i1 to i32
    %c0_i32_0 = arith.constant 0 : i32
    %2 = arith.cmpi ne, %1, %c0_i32_0 : i32
    scf.if %2 {
      %cst_8 = arith.constant 0.000000e+00 : f32
      %13 = vector.broadcast %cst_8 : f32 to vector<8x128xf32>
      %c0_9 = arith.constant 0 : index
      %c0_10 = arith.constant 0 : index
      %14 = vector.load %arg4[%c0_9, %c0_10] : memref<8x128xf32, #tpu.memory_space<vmem>>, vector<8x128xf32>
      tpu.vector_store %arg4[%c0_9, %c0_10], %13 {strides = array<i32>} : memref<8x128xf32, #tpu.memory_space<vmem>>, vector<8x128xf32>,
    } else {
    }
    %c0 = arith.constant 0 : index
    %c0_1 = arith.constant 0 : index
    %3 = vector.load %arg2[%c0, %c0_1] : memref<16x128xf32, #tpu.memory_space<vmem>>, vector<16x128xf32>
    %4 = math.absf %3 : vector<16x128xf32>
    %c0_2 = arith.constant 0 : index
    %c0_3 = arith.constant 0 : index
    %5 = vector.load %arg4[%c0_2, %c0_3] : memref<8x128xf32, #tpu.memory_space<vmem>>, vector<8x128xf32>
    %6 = vector.shape_cast %4 : vector<16x128xf32> to vector<2x8x128xf32>
    %cst = arith.constant dense<0.000000e+00> : vector<8x128xf32>
    %7 = vector.multi_reduction <add>, %6, %cst [0] : vector<2x8x128xf32> to vector<8x128xf32>
    %8 = arith.addf %5, %7 : vector<8x128xf32>
    %c0_4 = arith.constant 0 : index
    %c0_5 = arith.constant 0 : index
    %9 = vector.load %arg4[%c0_4, %c0_5] : memref<8x128xf32, #tpu.memory_space<vmem>>, vector<8x128xf32>
    tpu.vector_store %arg4[%c0_4, %c0_5], %8 {strides = array<i32>} : memref<8x128xf32, #tpu.memory_space<vmem>>, vector<8x128xf32>,
    %c0_i32_6 = arith.constant 0 : i32
    %10 = arith.cmpi eq, %arg1, %c0_i32_6 : i32
    %11 = arith.extui %10 : i1 to i32
    %c0_i32_7 = arith.constant 0 : i32
    %12 = arith.cmpi ne, %11, %c0_i32_7 : i32
    scf.if %12 {
      %c0_8 = arith.constant 0 : index
      %c0_9 = arith.constant 0 : index
      %13 = vector.load %arg4[%c0_8, %c0_9] : memref<8x128xf32, #tpu.memory_space<vmem>>, vector<8x128xf32>
      %cst_10 = arith.constant dense<0.000000e+00> : vector<128xf32>
      %14 = vector.multi_reduction <add>, %13, %cst_10 [0] : vector<8x128xf32> to vector<128xf32>
      %15 = vector.shape_cast %14 : vector<128xf32> to vector<1x128xf32>
      %c0_11 = arith.constant 0 : index
      %c0_12 = arith.constant 0 : index
      %16 = vector.load %arg3[%c0_11, %c0_12] : memref<1x128xf32, #tpu.memory_space<vmem>>, vector<1x128xf32>
      tpu.vector_store %arg3[%c0_11, %c0_12], %15 {strides = array<i32>} : memref<1x128xf32, #tpu.memory_space<vmem>>, vector<1x128xf32>,
    } else {
    }
    return
  }
  func.func @transform_0(%arg0: i32, %arg1: i32) -> (i32, i32) {
    %c1_i32 = arith.constant 1 : i32
    %0 = arith.muli %arg0, %c1_i32 : i32
    %1 = arith.addi %0, %arg1 : i32
    %c0_i32 = arith.constant 0 : i32
    %2 = arith.minsi %1, %c0_i32 : i32
    %c0_i32_0 = arith.constant 0 : i32
    %c0_i32_1 = arith.constant 0 : i32
    return %2, %c0_i32_0 : i32, i32
  }
  func.func @transform_1(%arg0: i32, %arg1: i32) -> (i32, i32) {
    %c0_i32 = arith.constant 0 : i32
    %c0_i32_0 = arith.constant 0 : i32
    return %arg0, %c0_i32 : i32, i32
  }
}

</mosaic_0001>

<llo_original>
// kernel: lp_norm_pallas.1
$region0: #{lp_norm_pallas.1}
  #allocation0 [shape = 'u32[]', space=smem, size = 0x4, offset = 0x4, fixed_abs, tag = 'smem constant byte address 0x4 - core index']
  #allocation1 [shape = 'u32[144,128]{1,0:T(1,128)}', space=vmem, size = 0x12000, scoped, tag = 'internal scratch']
  #allocation2 [shape = 'f32[8,128]{1,0:T(8,128)}', space=vmem, size = 0x1000, scoped, tag = 'scratch operand']
  %s0 = inlined_call_operand.vmem [shape: f32[16,128], index: 0, kind: input, shape index: {}]
  %s1 = inlined_call_operand.vmem [shape: f32[1,128], index: 1, kind: output, shape index: {}]
  %s2 = sld [smem:[#allocation0]]
  $region22: #{lp_norm_pallas.1} parent=0
    _
  %s4 = ssub.s32 1, %s2
  %s5 = scalar_select 0, %s4, %s2
  // Predicated region
  $region2: #{lp_norm_pallas.1} parent=0 // pred_check
    _
  $region3: #{lp_norm_pallas.1} parent=0 // pred_check_branch
    %7 = sbr.rel (0) target = $region5
  $region4: #{lp_norm_pallas.1} parent=0 // pred_region
    %s8 = sadd.s32 0, 0
    %p9 = scmp.lt.s32.totalorder %s8, 0
    %s10 = scalar_select %p9, %s8, 0
    %s11 = smul.u32 2, %s10
    %p12 = scmp.lt.s32.totalorder %s11, 1
    %s13 = scalar_select %p12, %s11, 1
    %s14 = smul.addr %s13, 8
    %s15 = scalar_lea.vmem %s0, %s14
    %s16 = sadd.s32 0, 0
    %p17 = scmp.lt.s32.totalorder %s16, 0
    %s18 = scalar_select %p17, %s16, 0
    %s19 = smul.u32 2, %s18
  $region5: #{lp_norm_pallas.1} parent=0 // pred_fallthru
    _
  %s20 = sadd.s32 0, 0
  %p21 = scmp.lt.s32.totalorder %s20, 0
  %s22 = scalar_select %p21, %s20, 0
  %s23 = smul.u32 2, %s22
  %p24 = scmp.lt.s32.totalorder %s23, 1
  %s25 = scalar_select %p24, %s23, 1
  %s26 = smul.addr %s25, 8
  %s27 = scalar_lea.vmem %s0, %s26
  %s28 = sadd.s32 0, 0
  %p29 = scmp.lt.s32.totalorder %s28, 0
  %s30 = scalar_select %p29, %s28, 0
  %s31 = smul.u32 2, %s30
  %p32 = scmp.lt.s32.totalorder %s31, 1
  %s33 = scalar_select %p32, %s31, 1
  %s34 = smul.addr %s33, 8
  %s35 = scalar_lea.vmem %s0, %s34
  %s36 = sadd.s32 0, 0
  %p37 = scmp.lt.s32.totalorder %s36, 0
  %s38 = scalar_select %p37, %s36, 0
  %s39 = smul.u32 2, %s38
  %p40 = scmp.eq.s32.totalorder 0, 0
  // Predicated region
  $region6: #{lp_norm_pallas.1} parent=0 // pred_check
    %p41 = pneg %p40
  $region7: #{lp_norm_pallas.1} parent=0 // pred_check_branch
    %43 = sbr.rel (%p41) target = $region9
  $region8: #{lp_norm_pallas.1} parent=0 // pred_region
    %44 = vst [vmem:[#allocation2] sm:$0xff] 0.0
  $region9: #{lp_norm_pallas.1} parent=0 // pred_fallthru
    _
  %v45 = vld [vmem:[%s35] sm:$0xff]
  %v46 = vld [vmem:[%s35 + $0x8] sm:$0xff]
  %v47 = vand.u32 2147483647, %v45
  %v48 = vand.u32 2147483647, %v46
  %v49 = vld [vmem:[#allocation2] sm:$0xff]
  %v50 = vadd.f32 %v47, %v48
  %v51 = vadd.f32 %v49, %v50
  %52 = vst [vmem:[#allocation2] sm:$0xff] %v51
  // Predicated region
  $region10: #{lp_norm_pallas.1} parent=0 // pred_check
    %p53 = pneg %p40
  $region11: #{lp_norm_pallas.1} parent=0 // pred_check_branch
    %55 = sbr.rel (%p53) target = $region13
  $region12: #{lp_norm_pallas.1} parent=0 // pred_region
    %v56 = vld [vmem:[#allocation2] sm:$0xff]
    %v57 = vrot.slane %v56, 4
    %v58 = vadd.f32 %v56, %v57
    %v59 = vrot.slane %v58, 2
    %v60 = vadd.f32 %v58, %v59
    %v61 = vrot.slane %v60, 1
    %v62 = vadd.f32 %v60, %v61
    %63 = vst [vmem:[%s1] sm:$0x1] %v62
  $region13: #{lp_norm_pallas.1} parent=0 // pred_fallthru
    _
  // Predicated region
  $region14: #{lp_norm_pallas.1} parent=0 // pred_check
    _
  $region15: #{lp_norm_pallas.1} parent=0 // pred_check_branch
    %65 = sbr.rel (0) target = $region17
  $region16: #{lp_norm_pallas.1} parent=0 // pred_region
    _
  $region17: #{lp_norm_pallas.1} parent=0 // pred_fallthru
    _
  // Predicated region
  $region18: #{lp_norm_pallas.1} parent=0 // pred_check
    _
  $region19: #{lp_norm_pallas.1} parent=0 // pred_check_branch
    %67 = sbr.rel (0) target = $region21
  $region20: #{lp_norm_pallas.1} parent=0 // pred_region
    _
  $region21: #{lp_norm_pallas.1} parent=0 // pred_fallthru
    _

</llo_original>
